<compile_context>
chip_gen: v7x
topology: tpu7x:2x2x1
jax: 0.10.0
libtpu: 0.0.40
codegen_flags: <defaults>
</compile_context>

<pallas_src>
import functools

import jax
import jax.numpy as jnp
from jax.experimental import pallas as pl
from jax.experimental.pallas import tpu as pltpu


def _round_up(n, m):
    return ((n + m - 1) // m) * m


# ----------------------------- Pallas kernel -------------------------------
def _fused_ae_kernel(*refs, n_layers, enc_layer_idx):
    """Fused multi-layer MLP: refs = (x, w0, b0, ..., w{L-1}, b{L-1}, enc, dec)."""
    x_ref = refs[0]
    enc_ref = refs[1 + 2 * n_layers]
    dec_ref = refs[2 + 2 * n_layers]

    h = x_ref[...].astype(jnp.float32)
    for li in range(n_layers):              # statically unrolled layer chain
        w_ref = refs[1 + 2 * li]
        b_ref = refs[2 + 2 * li]
        y = jnp.dot(h, w_ref[...], preferred_element_type=jnp.float32)
        y = y + b_ref[...].astype(jnp.float32)   # (1, Dout) bias broadcast
        if li < n_layers - 1:               # ReLU on every layer except out_layer
            y = jnp.maximum(y, 0.0)
        if li == enc_layer_idx:             # bottleneck output (post-ReLU)
            enc_ref[...] = y.astype(enc_ref.dtype)
        h = y
    dec_ref[...] = h.astype(dec_ref.dtype)


# --------------------------- tiling / VMEM helpers ---------------------------
_TILE_CANDIDATES = (128, 256, 384, 512, 768, 1024, 1536, 2048)


def _vmem_capacity_bytes():
    try:
        return int(pltpu.get_tpu_info().vmem_capacity_bytes)
    except Exception:
        return 64 * 1024 * 1024   # conservative default: v7x per-TensorCore VMEM


def _pick_tile_b(B, max_tile):
    max_tile = max(8, (max_tile // 8) * 8)
    # Small batch: a single exact block (block dim == full array dim is legal).
    if B <= min(max_tile, 256):
        return B
    cands = [t for t in _TILE_CANDIDATES if t <= max_tile]
    if not cands:
        return max_tile
    # Prefer >= 2 grid steps so both v7x TensorCores get work on the parallel axis.
    multi = [t for t in cands if pl.cdiv(B, t) >= 2]
    if multi:
        cands = multi
    # Minimize batch-padding waste (exact divisors win); tie-break toward
    # larger tiles (fewer grid steps -> less per-step overhead).
    return min(cands, key=lambda t: (_round_up(B, t) - B, -t))


# ------------------------------ Host wrapper --------------------------------
def prepare_params(params):
    """One-time preparation: flat layer list with (1, Dout) bias rows.

    Doing this once outside the per-call forward removes per-forward
    reshape/copy ops (helps small-batch latency)."""
    layers = [params["in_layer"], *params["encoder"],
              *params["decoder"], params["out_layer"]]
    flat = tuple((jnp.asarray(w), jnp.asarray(b).reshape(1, -1))
                 for (w, b) in layers)
    return {"layers": flat, "enc_layer_idx": len(params["encoder"])}


def autoencoder_forward(params, x, *, tile_b=None):
    """Runs the whole autoencoder forward in one fused Pallas TPU kernel."""
    prepared = params if (isinstance(params, dict) and "layers" in params) \
        else prepare_params(params)
    layers = prepared["layers"]
    enc_layer_idx = prepared["enc_layer_idx"]
    n_layers = len(layers)

    B, in_dim = x.shape
    dims = [in_dim] + [w.shape[1] for (w, _) in layers]
    enc_dim = dims[enc_layer_idx + 1]
    out_dim = dims[-1]

    # ---- generation-aware tile size & VMEM budget ----
    f32 = 4
    wb_bytes = sum(w.size * w.dtype.itemsize + b.size * b.dtype.itemsize
                   for (w, b) in layers)
    # Per batch-row VMEM cost: double-buffered x/enc/dec streams plus the
    # largest in-kernel intermediate activation pair (materialised between
    # matmuls in compiler-managed VMEM).
    per_row = f32 * (2 * (in_dim + enc_dim + out_dim)
                     + max(dims[i] + dims[i + 1] for i in range(n_layers)))
    vmem_cap = _vmem_capacity_bytes()
    vmem_budget = (vmem_cap * 3) // 4            # leave headroom for Mosaic scratch
    max_tile = max(8, min(2048, ((vmem_budget - 2 * wb_bytes) // per_row // 8) * 8))
    if tile_b is None:
        tile_b = _pick_tile_b(B, max_tile)
    B_p = _round_up(B, tile_b)
    grid = (B_p // tile_b,)

    # Pad the batch only when the tile does not divide it (the tile chooser
    # prefers exact divisors, so the common case has no wrapper-side copy).
    x_in = x if B_p == B else jnp.zeros((B_p, in_dim), x.dtype).at[:B].set(x)

    flat_wb = []
    for (w, b) in layers:
        flat_wb += [w, b]

    # ---- cost estimate on true (unpadded-feature) shapes ----
    flops = 2 * B_p * sum(dims[i] * dims[i + 1] for i in range(n_layers))
    bytes_accessed = f32 * B_p * (in_dim + enc_dim + out_dim) + wb_bytes
    cost = pl.CostEstimate(flops=int(flops), transcendentals=0,
                           bytes_accessed=int(bytes_accessed))

    needed = 2 * wb_bytes + tile_b * per_row
    vmem_limit = int(min(vmem_budget, max(2 * needed, 32 * 1024 * 1024)))
    vmem_limit = max(vmem_limit, needed)

    kernel = functools.partial(_fused_ae_kernel,
                               n_layers=n_layers, enc_layer_idx=enc_layer_idx)
    out_shape = (jax.ShapeDtypeStruct((B_p, enc_dim), x.dtype),
                 jax.ShapeDtypeStruct((B_p, out_dim), x.dtype))
    x_spec = pl.BlockSpec((tile_b, in_dim), lambda i: (i, 0))
    enc_spec = pl.BlockSpec((tile_b, enc_dim), lambda i: (i, 0))
    dec_spec = pl.BlockSpec((tile_b, out_dim), lambda i: (i, 0))

    # TODO(synk): layers whose weights exceed the VMEM budget would need an
    # inner K/N-tiled pipeline (pltpu.emit_pipeline); not needed at these sizes.
    def _run(single_buffer_weights):
        kw = ({"pipeline_mode": pl.Buffered(1)} if single_buffer_weights else {})
        wb_specs = []
        for li in range(n_layers):
            wb_specs.append(pl.BlockSpec((dims[li], dims[li + 1]),
                                         lambda i: (0, 0), **kw))
            wb_specs.append(pl.BlockSpec((1, dims[li + 1]),
                                         lambda i: (0, 0), **kw))
        return pl.pallas_call(
            kernel,
            out_shape=out_shape,
            grid_spec=pltpu.PrefetchScalarGridSpec(
                num_scalar_prefetch=0,
                grid=grid,
                in_specs=[x_spec, *wb_specs],
                out_specs=(enc_spec, dec_spec)),
            compiler_params=pltpu.CompilerParams(
                dimension_semantics=("parallel",),
                vmem_limit_bytes=int(vmem_limit)),
            cost_estimate=cost,
        )(x_in, *flat_wb)

    try:
        # Resident weights/biases (constant index_map) single-buffered.
        enc_p, dec_p = _run(True)
    except Exception:
        # Fallback if this jax version rejects pipeline_mode on these specs.
        enc_p, dec_p = _run(False)

    if B_p != B:
        enc_p, dec_p = enc_p[:B], dec_p[:B]
    return enc_p, dec_p


# ------------------------------ Parameter init -------------------------------
def init_linear(key, in_features, out_features, dtype=jnp.float32):
    """Mimics nn.Linear default init (uniform +/- 1/sqrt(fan_in)), W stored (in, out)."""
    kw, kb = jax.random.split(key)
    bound = 1.0 / (in_features ** 0.5)
    w = jax.random.uniform(kw, (in_features, out_features), dtype,
                           minval=-bound, maxval=bound)
    b = jax.random.uniform(kb, (out_features,), dtype,
                           minval=-bound, maxval=bound)
    return w, b


def init_autoencoder_params(key, in_dim, en_h_dims, de_h_dims):
    params = {}
    n_layers = 1 + (len(en_h_dims) - 1) + (len(de_h_dims) - 1) + 1
    keys = jax.random.split(key, n_layers)
    ki = 0

    params["in_layer"] = init_linear(keys[ki], in_dim, en_h_dims[0]); ki += 1

    params["encoder"] = []
    for k in range(len(en_h_dims) - 1):
        params["encoder"].append(init_linear(keys[ki], en_h_dims[k], en_h_dims[k + 1]))
        ki += 1

    params["decoder"] = []
    for k in range(len(de_h_dims) - 1):
        params["decoder"].append(init_linear(keys[ki], de_h_dims[k], de_h_dims[k + 1]))
        ki += 1

    params["out_layer"] = init_linear(keys[ki], de_h_dims[-1], in_dim); ki += 1
    return params


# ------------------------- pure-JAX reference check -------------------------
def autoencoder_ref(params, x):
    w, b = params["in_layer"]
    encoded = jax.nn.relu(x @ w + b)
    for (w, b) in params["encoder"]:
        encoded = jax.nn.relu(encoded @ w + b)
    decoded = encoded
    for (w, b) in params["decoder"]:
        decoded = jax.nn.relu(decoded @ w + b)
    w, b = params["out_layer"]
    decoded = decoded @ w + b
    return encoded, decoded


if __name__ == "__main__":
    # Small shapes consistent with the module: in_dim=16, bottleneck=8.
    batch = 4
    in_dim = 16
    en_h_dims = [32, 8]
    de_h_dims = [8, 32]

    key = jax.random.PRNGKey(0)
    kp, kx = jax.random.split(key)
    params = init_autoencoder_params(kp, in_dim, en_h_dims, de_h_dims)
    x = jax.random.normal(kx, (batch, in_dim), dtype=jnp.float32)

    prepared = prepare_params(params)           # one-time weight preparation
    encoded, decoded = autoencoder_forward(prepared, x)
    encoded = jax.block_until_ready(encoded)
    decoded = jax.block_until_ready(decoded)

    # Sanity-check against a pure-JAX reference.
    enc_ref, dec_ref = autoencoder_ref(params, x)
    assert encoded.shape == (batch, en_h_dims[-1])
    assert decoded.shape == (batch, in_dim)
    assert jnp.allclose(encoded, enc_ref, atol=1e-5, rtol=1e-5)
    assert jnp.allclose(decoded, dec_ref, atol=1e-5, rtol=1e-5)

    print("KERNEL_OK")
</pallas_src>

<mosaic_0001>
module attributes {stable_mosaic.version = 11 : i64} {
  func.func @_fused_ae_kernel(%arg0: i32, %arg1: memref<4x16xf32, #tpu.memory_space<vmem>>, %arg2: memref<16x32xf32, #tpu.memory_space<vmem>>, %arg3: memref<1x32xf32, #tpu.memory_space<vmem>>, %arg4: memref<32x8xf32, #tpu.memory_space<vmem>>, %arg5: memref<1x8xf32, #tpu.memory_space<vmem>>, %arg6: memref<8x32xf32, #tpu.memory_space<vmem>>, %arg7: memref<1x32xf32, #tpu.memory_space<vmem>>, %arg8: memref<32x16xf32, #tpu.memory_space<vmem>>, %arg9: memref<1x16xf32, #tpu.memory_space<vmem>>, %arg10: memref<4x8xf32, #tpu.memory_space<vmem>>, %arg11: memref<4x16xf32, #tpu.memory_space<vmem>>) attributes {dimension_semantics = [#tpu.dimension_semantics<parallel>], iteration_bounds = array<i64: 1>, scalar_prefetch = 0 : i64, scratch_operands = 0 : i64, tpu.core_type = #tpu.core_type<tc>, window_params = [{transform_indices = @transform_0, window_bounds = array<i64: 4, 16>}, {pipeline_mode = #tpu.pipeline_mode<synchronous>, transform_indices = @transform_1, window_bounds = array<i64: 16, 32>}, {pipeline_mode = #tpu.pipeline_mode<synchronous>, transform_indices = @transform_2, window_bounds = array<i64: 1, 32>}, {pipeline_mode = #tpu.pipeline_mode<synchronous>, transform_indices = @transform_3, window_bounds = array<i64: 32, 8>}, {pipeline_mode = #tpu.pipeline_mode<synchronous>, transform_indices = @transform_4, window_bounds = array<i64: 1, 8>}, {pipeline_mode = #tpu.pipeline_mode<synchronous>, transform_indices = @transform_5, window_bounds = array<i64: 8, 32>}, {pipeline_mode = #tpu.pipeline_mode<synchronous>, transform_indices = @transform_6, window_bounds = array<i64: 1, 32>}, {pipeline_mode = #tpu.pipeline_mode<synchronous>, transform_indices = @transform_7, window_bounds = array<i64: 32, 16>}, {pipeline_mode = #tpu.pipeline_mode<synchronous>, transform_indices = @transform_8, window_bounds = array<i64: 1, 16>}, {transform_indices = @transform_9, window_bounds = array<i64: 4, 8>}, {transform_indices = @transform_10, window_bounds = array<i64: 4, 16>}]} {
    %c0 = arith.constant 0 : index
    %c0_0 = arith.constant 0 : index
    %0 = vector.load %arg1[%c0, %c0_0] : memref<4x16xf32, #tpu.memory_space<vmem>>, vector<4x16xf32>
    %c0_1 = arith.constant 0 : index
    %c0_2 = arith.constant 0 : index
    %1 = vector.load %arg2[%c0_1, %c0_2] : memref<16x32xf32, #tpu.memory_space<vmem>>, vector<16x32xf32>
    %cst = arith.constant dense<0.000000e+00> : vector<4x32xf32>
    %2 = tpu.matmul %0, %1, %cst {dimension_numbers = #tpu.dot_dimension_numbers<[1], [0], [0], [1], [0, 0, 1, 1], [], []>} : vector<4x16xf32>, vector<16x32xf32>, vector<4x32xf32> -> vector<4x32xf32>
    %c0_3 = arith.constant 0 : index
    %c0_4 = arith.constant 0 : index
    %3 = vector.load %arg3[%c0_3, %c0_4] : memref<1x32xf32, #tpu.memory_space<vmem>>, vector<1x32xf32>
    %4 = vector.broadcast %3 : vector<1x32xf32> to vector<4x32xf32>
    %5 = arith.addf %2, %4 : vector<4x32xf32>
    %cst_5 = arith.constant 0.000000e+00 : f32
    %6 = vector.broadcast %cst_5 : f32 to vector<4x32xf32>
    %7 = arith.maximumf %5, %6 : vector<4x32xf32>
    %c0_6 = arith.constant 0 : index
    %c0_7 = arith.constant 0 : index
    %8 = vector.load %arg4[%c0_6, %c0_7] : memref<32x8xf32, #tpu.memory_space<vmem>>, vector<32x8xf32>
    %cst_8 = arith.constant dense<0.000000e+00> : vector<4x8xf32>
    %9 = tpu.matmul %7, %8, %cst_8 {dimension_numbers = #tpu.dot_dimension_numbers<[1], [0], [0], [1], [0, 0, 1, 1], [], []>} : vector<4x32xf32>, vector<32x8xf32>, vector<4x8xf32> -> vector<4x8xf32>
    %c0_9 = arith.constant 0 : index
    %c0_10 = arith.constant 0 : index
    %10 = vector.load %arg5[%c0_9, %c0_10] : memref<1x8xf32, #tpu.memory_space<vmem>>, vector<1x8xf32>
    %11 = vector.broadcast %10 : vector<1x8xf32> to vector<4x8xf32>
    %12 = arith.addf %9, %11 : vector<4x8xf32>
    %cst_11 = arith.constant 0.000000e+00 : f32
    %13 = vector.broadcast %cst_11 : f32 to vector<4x8xf32>
    %14 = arith.maximumf %12, %13 : vector<4x8xf32>
    %c0_12 = arith.constant 0 : index
    %c0_13 = arith.constant 0 : index
    %15 = vector.load %arg10[%c0_12, %c0_13] : memref<4x8xf32, #tpu.memory_space<vmem>>, vector<4x8xf32>
    tpu.vector_store %arg10[%c0_12, %c0_13], %14 {strides = array<i32>} : memref<4x8xf32, #tpu.memory_space<vmem>>, vector<4x8xf32>,
    %c0_14 = arith.constant 0 : index
    %c0_15 = arith.constant 0 : index
    %16 = vector.load %arg6[%c0_14, %c0_15] : memref<8x32xf32, #tpu.memory_space<vmem>>, vector<8x32xf32>
    %cst_16 = arith.constant dense<0.000000e+00> : vector<4x32xf32>
    %17 = tpu.matmul %14, %16, %cst_16 {dimension_numbers = #tpu.dot_dimension_numbers<[1], [0], [0], [1], [0, 0, 1, 1], [], []>} : vector<4x8xf32>, vector<8x32xf32>, vector<4x32xf32> -> vector<4x32xf32>
    %c0_17 = arith.constant 0 : index
    %c0_18 = arith.constant 0 : index
    %18 = vector.load %arg7[%c0_17, %c0_18] : memref<1x32xf32, #tpu.memory_space<vmem>>, vector<1x32xf32>
    %19 = vector.broadcast %18 : vector<1x32xf32> to vector<4x32xf32>
    %20 = arith.addf %17, %19 : vector<4x32xf32>
    %cst_19 = arith.constant 0.000000e+00 : f32
    %21 = vector.broadcast %cst_19 : f32 to vector<4x32xf32>
    %22 = arith.maximumf %20, %21 : vector<4x32xf32>
    %c0_20 = arith.constant 0 : index
    %c0_21 = arith.constant 0 : index
    %23 = vector.load %arg8[%c0_20, %c0_21] : memref<32x16xf32, #tpu.memory_space<vmem>>, vector<32x16xf32>
    %cst_22 = arith.constant dense<0.000000e+00> : vector<4x16xf32>
    %24 = tpu.matmul %22, %23, %cst_22 {dimension_numbers = #tpu.dot_dimension_numbers<[1], [0], [0], [1], [0, 0, 1, 1], [], []>} : vector<4x32xf32>, vector<32x16xf32>, vector<4x16xf32> -> vector<4x16xf32>
    %c0_23 = arith.constant 0 : index
    %c0_24 = arith.constant 0 : index
    %25 = vector.load %arg9[%c0_23, %c0_24] : memref<1x16xf32, #tpu.memory_space<vmem>>, vector<1x16xf32>
    %26 = vector.broadcast %25 : vector<1x16xf32> to vector<4x16xf32>
    %27 = arith.addf %24, %26 : vector<4x16xf32>
    %c0_25 = arith.constant 0 : index
    %c0_26 = arith.constant 0 : index
    %28 = vector.load %arg11[%c0_25, %c0_26] : memref<4x16xf32, #tpu.memory_space<vmem>>, vector<4x16xf32>
    tpu.vector_store %arg11[%c0_25, %c0_26], %27 {strides = array<i32>} : memref<4x16xf32, #tpu.memory_space<vmem>>, vector<4x16xf32>,
    return
  }
  func.func @transform_0(%arg0: i32) -> (i32, i32) {
    %c0_i32 = arith.constant 0 : i32
    %c0_i32_0 = arith.constant 0 : i32
    return %arg0, %c0_i32 : i32, i32
  }
  func.func @transform_1(%arg0: i32) -> (i32, i32) {
    %c0_i32 = arith.constant 0 : i32
    %c0_i32_0 = arith.constant 0 : i32
    %c0_i32_1 = arith.constant 0 : i32
    return %c0_i32, %c0_i32_0 : i32, i32
  }
  func.func @transform_2(%arg0: i32) -> (i32, i32) {
    %c0_i32 = arith.constant 0 : i32
    %c0_i32_0 = arith.constant 0 : i32
    %c0_i32_1 = arith.constant 0 : i32
    return %c0_i32, %c0_i32_0 : i32, i32
  }
  func.func @transform_3(%arg0: i32) -> (i32, i32) {
    %c0_i32 = arith.constant 0 : i32
    %c0_i32_0 = arith.constant 0 : i32
    %c0_i32_1 = arith.constant 0 : i32
    return %c0_i32, %c0_i32_0 : i32, i32
  }
  func.func @transform_4(%arg0: i32) -> (i32, i32) {
    %c0_i32 = arith.constant 0 : i32
    %c0_i32_0 = arith.constant 0 : i32
    %c0_i32_1 = arith.constant 0 : i32
    return %c0_i32, %c0_i32_0 : i32, i32
  }
  func.func @transform_5(%arg0: i32) -> (i32, i32) {
    %c0_i32 = arith.constant 0 : i32
    %c0_i32_0 = arith.constant 0 : i32
    %c0_i32_1 = arith.constant 0 : i32
    return %c0_i32, %c0_i32_0 : i32, i32
  }
  func.func @transform_6(%arg0: i32) -> (i32, i32) {
    %c0_i32 = arith.constant 0 : i32
    %c0_i32_0 = arith.constant 0 : i32
    %c0_i32_1 = arith.constant 0 : i32
    return %c0_i32, %c0_i32_0 : i32, i32
  }
  func.func @transform_7(%arg0: i32) -> (i32, i32) {
    %c0_i32 = arith.constant 0 : i32
    %c0_i32_0 = arith.constant 0 : i32
    %c0_i32_1 = arith.constant 0 : i32
    return %c0_i32, %c0_i32_0 : i32, i32
  }
  func.func @transform_8(%arg0: i32) -> (i32, i32) {
    %c0_i32 = arith.constant 0 : i32
    %c0_i32_0 = arith.constant 0 : i32
    %c0_i32_1 = arith.constant 0 : i32
    return %c0_i32, %c0_i32_0 : i32, i32
  }
  func.func @transform_9(%arg0: i32) -> (i32, i32) {
    %c0_i32 = arith.constant 0 : i32
    %c0_i32_0 = arith.constant 0 : i32
    return %arg0, %c0_i32 : i32, i32
  }
  func.func @transform_10(%arg0: i32) -> (i32, i32) {
    %c0_i32 = arith.constant 0 : i32
    %c0_i32_0 = arith.constant 0 : i32
    return %arg0, %c0_i32 : i32, i32
  }
}

module attributes {stable_mosaic.version = 11 : i64} {
  func.func @_fused_ae_kernel(%arg0: i32, %arg1: memref<4x16xf32, #tpu.memory_space<vmem>>, %arg2: memref<16x32xf32, #tpu.memory_space<vmem>>, %arg3: memref<1x32xf32, #tpu.memory_space<vmem>>, %arg4: memref<32x8xf32, #tpu.memory_space<vmem>>, %arg5: memref<1x8xf32, #tpu.memory_space<vmem>>, %arg6: memref<8x32xf32, #tpu.memory_space<vmem>>, %arg7: memref<1x32xf32, #tpu.memory_space<vmem>>, %arg8: memref<32x16xf32, #tpu.memory_space<vmem>>, %arg9: memref<1x16xf32, #tpu.memory_space<vmem>>, %arg10: memref<4x8xf32, #tpu.memory_space<vmem>>, %arg11: memref<4x16xf32, #tpu.memory_space<vmem>>) attributes {dimension_semantics = [#tpu.dimension_semantics<parallel>], iteration_bounds = array<i64: 1>, scalar_prefetch = 0 : i64, scratch_operands = 0 : i64, tpu.core_type = #tpu.core_type<tc>, window_params = [{transform_indices = @transform_0, window_bounds = array<i64: 4, 16>}, {pipeline_mode = #tpu.pipeline_mode<synchronous>, transform_indices = @transform_1, window_bounds = array<i64: 16, 32>}, {pipeline_mode = #tpu.pipeline_mode<synchronous>, transform_indices = @transform_2, window_bounds = array<i64: 1, 32>}, {pipeline_mode = #tpu.pipeline_mode<synchronous>, transform_indices = @transform_3, window_bounds = array<i64: 32, 8>}, {pipeline_mode = #tpu.pipeline_mode<synchronous>, transform_indices = @transform_4, window_bounds = array<i64: 1, 8>}, {pipeline_mode = #tpu.pipeline_mode<synchronous>, transform_indices = @transform_5, window_bounds = array<i64: 8, 32>}, {pipeline_mode = #tpu.pipeline_mode<synchronous>, transform_indices = @transform_6, window_bounds = array<i64: 1, 32>}, {pipeline_mode = #tpu.pipeline_mode<synchronous>, transform_indices = @transform_7, window_bounds = array<i64: 32, 16>}, {pipeline_mode = #tpu.pipeline_mode<synchronous>, transform_indices = @transform_8, window_bounds = array<i64: 1, 16>}, {transform_indices = @transform_9, window_bounds = array<i64: 4, 8>}, {transform_indices = @transform_10, window_bounds = array<i64: 4, 16>}]} {
    %c0 = arith.constant 0 : index
    %c0_0 = arith.constant 0 : index
    %0 = vector.load %arg1[%c0, %c0_0] : memref<4x16xf32, #tpu.memory_space<vmem>>, vector<4x16xf32>
    %c0_1 = arith.constant 0 : index
    %c0_2 = arith.constant 0 : index
    %1 = vector.load %arg2[%c0_1, %c0_2] : memref<16x32xf32, #tpu.memory_space<vmem>>, vector<16x32xf32>
    %cst = arith.constant dense<0.000000e+00> : vector<4x32xf32>
    %2 = tpu.matmul %0, %1, %cst {dimension_numbers = #tpu.dot_dimension_numbers<[1], [0], [0], [1], [0, 0, 1, 1], [], []>} : vector<4x16xf32>, vector<16x32xf32>, vector<4x32xf32> -> vector<4x32xf32>
    %c0_3 = arith.constant 0 : index
    %c0_4 = arith.constant 0 : index
    %3 = vector.load %arg3[%c0_3, %c0_4] : memref<1x32xf32, #tpu.memory_space<vmem>>, vector<1x32xf32>
    %4 = vector.broadcast %3 : vector<1x32xf32> to vector<4x32xf32>
    %5 = arith.addf %2, %4 : vector<4x32xf32>
    %cst_5 = arith.constant 0.000000e+00 : f32
    %6 = vector.broadcast %cst_5 : f32 to vector<4x32xf32>
    %7 = arith.maximumf %5, %6 : vector<4x32xf32>
    %c0_6 = arith.constant 0 : index
    %c0_7 = arith.constant 0 : index
    %8 = vector.load %arg4[%c0_6, %c0_7] : memref<32x8xf32, #tpu.memory_space<vmem>>, vector<32x8xf32>
    %cst_8 = arith.constant dense<0.000000e+00> : vector<4x8xf32>
    %9 = tpu.matmul %7, %8, %cst_8 {dimension_numbers = #tpu.dot_dimension_numbers<[1], [0], [0], [1], [0, 0, 1, 1], [], []>} : vector<4x32xf32>, vector<32x8xf32>, vector<4x8xf32> -> vector<4x8xf32>
    %c0_9 = arith.constant 0 : index
    %c0_10 = arith.constant 0 : index
    %10 = vector.load %arg5[%c0_9, %c0_10] : memref<1x8xf32, #tpu.memory_space<vmem>>, vector<1x8xf32>
    %11 = vector.broadcast %10 : vector<1x8xf32> to vector<4x8xf32>
    %12 = arith.addf %9, %11 : vector<4x8xf32>
    %cst_11 = arith.constant 0.000000e+00 : f32
    %13 = vector.broadcast %cst_11 : f32 to vector<4x8xf32>
    %14 = arith.maximumf %12, %13 : vector<4x8xf32>
    %c0_12 = arith.constant 0 : index
    %c0_13 = arith.constant 0 : index
    %15 = vector.load %arg10[%c0_12, %c0_13] : memref<4x8xf32, #tpu.memory_space<vmem>>, vector<4x8xf32>
    tpu.vector_store %arg10[%c0_12, %c0_13], %14 {strides = array<i32>} : memref<4x8xf32, #tpu.memory_space<vmem>>, vector<4x8xf32>,
    %c0_14 = arith.constant 0 : index
    %c0_15 = arith.constant 0 : index
    %16 = vector.load %arg6[%c0_14, %c0_15] : memref<8x32xf32, #tpu.memory_space<vmem>>, vector<8x32xf32>
    %cst_16 = arith.constant dense<0.000000e+00> : vector<4x32xf32>
    %17 = tpu.matmul %14, %16, %cst_16 {dimension_numbers = #tpu.dot_dimension_numbers<[1], [0], [0], [1], [0, 0, 1, 1], [], []>} : vector<4x8xf32>, vector<8x32xf32>, vector<4x32xf32> -> vector<4x32xf32>
    %c0_17 = arith.constant 0 : index
    %c0_18 = arith.constant 0 : index
    %18 = vector.load %arg7[%c0_17, %c0_18] : memref<1x32xf32, #tpu.memory_space<vmem>>, vector<1x32xf32>
    %19 = vector.broadcast %18 : vector<1x32xf32> to vector<4x32xf32>
    %20 = arith.addf %17, %19 : vector<4x32xf32>
    %cst_19 = arith.constant 0.000000e+00 : f32
    %21 = vector.broadcast %cst_19 : f32 to vector<4x32xf32>
    %22 = arith.maximumf %20, %21 : vector<4x32xf32>
    %c0_20 = arith.constant 0 : index
    %c0_21 = arith.constant 0 : index
    %23 = vector.load %arg8[%c0_20, %c0_21] : memref<32x16xf32, #tpu.memory_space<vmem>>, vector<32x16xf32>
    %cst_22 = arith.constant dense<0.000000e+00> : vector<4x16xf32>
    %24 = tpu.matmul %22, %23, %cst_22 {dimension_numbers = #tpu.dot_dimension_numbers<[1], [0], [0], [1], [0, 0, 1, 1], [], []>} : vector<4x32xf32>, vector<32x16xf32>, vector<4x16xf32> -> vector<4x16xf32>
    %c0_23 = arith.constant 0 : index
    %c0_24 = arith.constant 0 : index
    %25 = vector.load %arg9[%c0_23, %c0_24] : memref<1x16xf32, #tpu.memory_space<vmem>>, vector<1x16xf32>
    %26 = vector.broadcast %25 : vector<1x16xf32> to vector<4x16xf32>
    %27 = arith.addf %24, %26 : vector<4x16xf32>
    %c0_25 = arith.constant 0 : index
    %c0_26 = arith.constant 0 : index
    %28 = vector.load %arg11[%c0_25, %c0_26] : memref<4x16xf32, #tpu.memory_space<vmem>>, vector<4x16xf32>
    tpu.vector_store %arg11[%c0_25, %c0_26], %27 {strides = array<i32>} : memref<4x16xf32, #tpu.memory_space<vmem>>, vector<4x16xf32>,
    return
  }
  func.func @transform_0(%arg0: i32) -> (i32, i32) {
    %c0_i32 = arith.constant 0 : i32
    %c0_i32_0 = arith.constant 0 : i32
    return %arg0, %c0_i32 : i32, i32
  }
  func.func @transform_1(%arg0: i32) -> (i32, i32) {
    %c0_i32 = arith.constant 0 : i32
    %c0_i32_0 = arith.constant 0 : i32
    %c0_i32_1 = arith.constant 0 : i32
    return %c0_i32, %c0_i32_0 : i32, i32
  }
  func.func @transform_2(%arg0: i32) -> (i32, i32) {
    %c0_i32 = arith.constant 0 : i32
    %c0_i32_0 = arith.constant 0 : i32
    %c0_i32_1 = arith.constant 0 : i32
    return %c0_i32, %c0_i32_0 : i32, i32
  }
  func.func @transform_3(%arg0: i32) -> (i32, i32) {
    %c0_i32 = arith.constant 0 : i32
    %c0_i32_0 = arith.constant 0 : i32
    %c0_i32_1 = arith.constant 0 : i32
    return %c0_i32, %c0_i32_0 : i32, i32
  }
  func.func @transform_4(%arg0: i32) -> (i32, i32) {
    %c0_i32 = arith.constant 0 : i32
    %c0_i32_0 = arith.constant 0 : i32
    %c0_i32_1 = arith.constant 0 : i32
    return %c0_i32, %c0_i32_0 : i32, i32
  }
  func.func @transform_5(%arg0: i32) -> (i32, i32) {
    %c0_i32 = arith.constant 0 : i32
    %c0_i32_0 = arith.constant 0 : i32
    %c0_i32_1 = arith.constant 0 : i32
    return %c0_i32, %c0_i32_0 : i32, i32
  }
  func.func @transform_6(%arg0: i32) -> (i32, i32) {
    %c0_i32 = arith.constant 0 : i32
    %c0_i32_0 = arith.constant 0 : i32
    %c0_i32_1 = arith.constant 0 : i32
    return %c0_i32, %c0_i32_0 : i32, i32
  }
  func.func @transform_7(%arg0: i32) -> (i32, i32) {
    %c0_i32 = arith.constant 0 : i32
    %c0_i32_0 = arith.constant 0 : i32
    %c0_i32_1 = arith.constant 0 : i32
    return %c0_i32, %c0_i32_0 : i32, i32
  }
  func.func @transform_8(%arg0: i32) -> (i32, i32) {
    %c0_i32 = arith.constant 0 : i32
    %c0_i32_0 = arith.constant 0 : i32
    %c0_i32_1 = arith.constant 0 : i32
    return %c0_i32, %c0_i32_0 : i32, i32
  }
  func.func @transform_9(%arg0: i32) -> (i32, i32) {
    %c0_i32 = arith.constant 0 : i32
    %c0_i32_0 = arith.constant 0 : i32
    return %arg0, %c0_i32 : i32, i32
  }
  func.func @transform_10(%arg0: i32) -> (i32, i32) {
    %c0_i32 = arith.constant 0 : i32
    %c0_i32_0 = arith.constant 0 : i32
    return %arg0, %c0_i32 : i32, i32
  }
}

</mosaic_0001>

<llo_original>
// kernel: tpu_custom_call.1
$region0: #{tpu_custom_call.1}
  #allocation0 [shape = 'u32[]', space=smem, size = 0x4, offset = 0x4, fixed_abs, tag = 'smem constant byte address 0x4 - core index']
  #allocation1 [shape = 'u32[144,128]{1,0:T(1,128)}', space=vmem, size = 0x12000, scoped, tag = 'internal scratch']
  %s0 = inlined_call_operand.vmem [shape: f32[4,16], index: 0, kind: input, shape index: {}]
  %s1 = inlined_call_operand.vmem [shape: f32[16,32], index: 1, kind: input, shape index: {}]
  %s2 = inlined_call_operand.vmem [shape: f32[1,32], index: 2, kind: input, shape index: {}]
  %s3 = inlined_call_operand.vmem [shape: f32[32,8], index: 3, kind: input, shape index: {}]
  %s4 = inlined_call_operand.vmem [shape: f32[1,8], index: 4, kind: input, shape index: {}]
  %s5 = inlined_call_operand.vmem [shape: f32[8,32], index: 5, kind: input, shape index: {}]
  %s6 = inlined_call_operand.vmem [shape: f32[1,32], index: 6, kind: input, shape index: {}]
  %s7 = inlined_call_operand.vmem [shape: f32[32,16], index: 7, kind: input, shape index: {}]
  %s8 = inlined_call_operand.vmem [shape: f32[1,16], index: 8, kind: input, shape index: {}]
  %s9 = inlined_call_operand.hbm [shape: f32[4,8], index: 9, kind: output, shape index: {0}]
  %s10 = inlined_call_operand.hbm [shape: f32[4,16], index: 10, kind: output, shape index: {1}]
  %11 = xla_tuple %s9, %s10
  %s12 = sld [smem:[#allocation0]]
  $region54: #{tpu_custom_call.1} parent=0
    _
  %s14 = ssub.s32 1, %s12
  %s15 = scalar_select 0, %s14, %s12
  $region1: #{tpu_custom_call.1} parent=0
    #allocation2 [shape = 'u8[2048]{0}', space=vmem, size = 0x800, scoped, tag = 'output window, operand 0, single buffered']
    #allocation3 [shape = 's32[1]{0}', space=sflag, size = 0x4, scoped, tag = 'scoped memory for tpu_custom_call.1']
    #allocation4 [shape = 'u8[2048]{0}', space=vmem, size = 0x800, scoped, tag = 'output window, operand 1, single buffered']
    #allocation5 [shape = 's32[1]{0}', space=sflag, size = 0x4, scoped, tag = 'scoped memory for tpu_custom_call.1']
    %16 = vsyncpa [#allocation3], 0
    %17 = vsyncpa [#allocation5], 0
    // Predicated region
    $region2: #{tpu_custom_call.1} parent=1 // pred_check
      _
    $region3: #{tpu_custom_call.1} parent=1 // pred_check_branch
      %19 = sbr.rel (0) target = $region5
    $region4: #{tpu_custom_call.1} parent=1 // pred_region
      _
    $region5: #{tpu_custom_call.1} parent=1 // pred_fallthru
      _
    // Predicated region
    $region6: #{tpu_custom_call.1} parent=1 // pred_check
      _
    $region7: #{tpu_custom_call.1} parent=1 // pred_check_branch
      %21 = sbr.rel (0) target = $region9
    $region8: #{tpu_custom_call.1} parent=1 // pred_region
      _
    $region9: #{tpu_custom_call.1} parent=1 // pred_fallthru
      _
    // Predicated region
    $region10: #{tpu_custom_call.1} parent=1 // pred_check
      _
    $region11: #{tpu_custom_call.1} parent=1 // pred_check_branch
      %23 = sbr.rel (0) target = $region13
    $region12: #{tpu_custom_call.1} parent=1 // pred_region
      _
    $region13: #{tpu_custom_call.1} parent=1 // pred_fallthru
      _
    // Predicated region
    $region14: #{tpu_custom_call.1} parent=1 // pred_check
      _
    $region15: #{tpu_custom_call.1} parent=1 // pred_check_branch
      %25 = sbr.rel (0) target = $region17
    $region16: #{tpu_custom_call.1} parent=1 // pred_region
      _
    $region17: #{tpu_custom_call.1} parent=1 // pred_fallthru
      _
    // Predicated region
    $region18: #{tpu_custom_call.1} parent=1 // pred_check
      _
    $region19: #{tpu_custom_call.1} parent=1 // pred_check_branch
      %27 = sbr.rel (0) target = $region21
    $region20: #{tpu_custom_call.1} parent=1 // pred_region
      _
    $region21: #{tpu_custom_call.1} parent=1 // pred_fallthru
      _
    // Predicated region
    $region22: #{tpu_custom_call.1} parent=1 // pred_check
      _
    $region23: #{tpu_custom_call.1} parent=1 // pred_check_branch
      %29 = sbr.rel (0) target = $region25
    $region24: #{tpu_custom_call.1} parent=1 // pred_region
      _
    $region25: #{tpu_custom_call.1} parent=1 // pred_fallthru
      _
    // Predicated region
    $region26: #{tpu_custom_call.1} parent=1 // pred_check
      _
    $region27: #{tpu_custom_call.1} parent=1 // pred_check_branch
      %31 = sbr.rel (0) target = $region29
    $region28: #{tpu_custom_call.1} parent=1 // pred_region
      _
    $region29: #{tpu_custom_call.1} parent=1 // pred_fallthru
      _
    // Predicated region
    $region30: #{tpu_custom_call.1} parent=1 // pred_check
      _
    $region31: #{tpu_custom_call.1} parent=1 // pred_check_branch
      %33 = sbr.rel (0) target = $region33
    $region32: #{tpu_custom_call.1} parent=1 // pred_region
      _
    $region33: #{tpu_custom_call.1} parent=1 // pred_fallthru
      _
    // Predicated region
    $region34: #{tpu_custom_call.1} parent=1 // pred_check
      _
    $region35: #{tpu_custom_call.1} parent=1 // pred_check_branch
      %35 = sbr.rel (0) target = $region37
    $region36: #{tpu_custom_call.1} parent=1 // pred_region
      _
    $region37: #{tpu_custom_call.1} parent=1 // pred_fallthru
      _
    %v36 = vld [vmem:[%s0] sm:$0xf]
    %v37 = vld [vmem:[%s1] sm:$0xff]
    %v38 = vld [vmem:[%s1 + $0x8] sm:$0xff]
    %v39 = vld [vmem:[%s2] sm:$0x1]
    %v41 = vlaneseq
    %v42 = vshrl.u32 %v41, 7
    %v43 = vsub.s32 0, %v42
    %v44 = vrot.slane %v39, %v43
    %vm46 = vcmask 130048
    %v48 = vsel %vm46, %v36, 0
    %50 = vmatprep.subr.mxu0 0.0
    %51 = vmatpush1.msra.mxu0 %v37
    %52 = vmatprep.subr.mxu0 0.0
    %53 = vmatpush1.msra.mxu0 %v38
    %54 = vmatprep.subr.mxu0 0.0
    %55 = vmatpush1.msra.mxu0 0.0
    %56 = vmatprep.subr.mxu0 0.0
    %57 = vmatpush1.msra.mxu0 0.0
    %58 = vmatprep.subr.mxu0 0.0
    %59 = vmatpush1.msra.mxu0 0.0
    %60 = vmatprep.subr.mxu0 0.0
    %61 = vmatpush1.msra.mxu0 0.0
    %62 = vmatprep.subr.mxu0 0.0
    %63 = vmatpush1.msra.mxu0 0.0
    %64 = vmatprep.subr.mxu0 0.0
    %65 = vmatpush1.msra.mxu0 0.0
    %66 = vmatprep.subr.mxu0 0.0
    %67 = vmatpush1.msra.mxu0 0.0
    %68 = vmatprep.subr.mxu0 0.0
    %69 = vmatpush1.msra.mxu0 0.0
    %70 = vmatprep.subr.mxu0 0.0
    %71 = vmatpush1.msra.mxu0 0.0
    %72 = vmatprep.subr.mxu0 0.0
    %73 = vmatpush1.msra.mxu0 0.0
    %74 = vmatprep.subr.mxu0 0.0
    %75 = vmatpush1.msra.mxu0 0.0
    %76 = vmatprep.subr.mxu0 0.0
    %77 = vmatpush1.msra.mxu0 0.0
    %78 = vmatprep.subr.mxu0 0.0
    %79 = vmatpush1.msra.mxu0 0.0
    %80 = vmatprep.subr.mxu0 0.0
    %81 = vmatpush1.msra.mxu0 0.0
    %82 = vmatprep.subr.mxu0 0.0
    %83 = vmatpush1.msra.mxu0 0.0
    %84 = vmatprep.subr.mxu0 0.0
    %85 = vmatpush1.msra.mxu0 0.0
    %86 = vmatprep.subr.mxu0 0.0
    %87 = vmatpush1.msra.mxu0 0.0
    %88 = vmatprep.subr.mxu0 0.0
    %89 = vmatpush1.msra.mxu0 0.0
    %90 = vmatprep.subr.mxu0 0.0
    %91 = vmatpush1.msra.mxu0 0.0
    %92 = vmatprep.subr.mxu0 0.0
    %93 = vmatpush1.msra.mxu0 0.0
    %94 = vmatprep.subr.mxu0 0.0
    %95 = vmatpush1.msra.mxu0 0.0
    %96 = vmatprep.subr.mxu0 0.0
    %97 = vmatpush1.msra.mxu0 0.0
    %98 = vmatprep.subr.mxu0 0.0
    %99 = vmatpush1.msra.mxu0 0.0
    %100 = vmatprep.subr.mxu0 0.0
    %101 = vmatpush1.msra.mxu0 0.0
    %102 = vmatprep.subr.mxu0 0.0
    %103 = vmatpush1.msra.mxu0 0.0
    %104 = vmatprep.subr.mxu0 0.0
    %105 = vmatpush1.msra.mxu0 0.0
    %106 = vmatprep.subr.mxu0 0.0
    %107 = vmatpush1.msra.mxu0 0.0
    %108 = vmatprep.subr.mxu0 0.0
    %109 = vmatpush1.msra.mxu0 0.0
    %110 = vmatprep.subr.mxu0 0.0
    %111 = vmatpush1.msra.mxu0 0.0
    %112 = vmatprep.subr.mxu0 0.0
    %113 = vmatpush1.msra.mxu0 0.0
    %114 = vmatprep.mubr.f32.mxu0 0.0
    %115 = vmatmul.mubr.f32.gmra.mrb[0].mxu0 %v48
    %v116 = vpop.f32.mrb[0].mxu0
    %v117 = vadd.f32 %v44, %v116
    %v118 = vpop.f32.mrb[0].mxu0
    %119 = vdwg.mxu0
    %v120 = vmax.f32 %v117, 0.0
    %v121 = vld [vmem:[%s3] sm:$0xff]
    %v122 = vld [vmem:[%s3 + $0x8] sm:$0xff]
    %v123 = vld [vmem:[%s3 + $0x10] sm:$0xff]
    %v124 = vld [vmem:[%s3 + $0x18] sm:$0xff]
    %v125 = vld [vmem:[%s4] sm:$0x1]
    %v127 = vlaneseq
    %v128 = vshrl.u32 %v127, 7
    %v129 = vsub.s32 0, %v128
    %v130 = vrot.slane %v125, %v129
    %vm132 = vcmask 261120
    %v134 = vsel %vm132, %v120, 0
    %136 = vmatprep.subr.mxu0 0.0
    %137 = vmatpush1.msra.mxu0 %v121
    %138 = vmatprep.subr.mxu0 0.0
    %139 = vmatpush1.msra.mxu0 %v122
    %140 = vmatprep.subr.mxu0 0.0
    %141 = vmatpush1.msra.mxu0 %v123
    %142 = vmatprep.subr.mxu0 0.0
    %143 = vmatpush1.msra.mxu0 %v124
    %144 = vmatprep.subr.mxu0 0.0
    %145 = vmatpush1.msra.mxu0 0.0
    %146 = vmatprep.subr.mxu0 0.0
    %147 = vmatpush1.msra.mxu0 0.0
    %148 = vmatprep.subr.mxu0 0.0
    %149 = vmatpush1.msra.mxu0 0.0
    %150 = vmatprep.subr.mxu0 0.0
    %151 = vmatpush1.msra.mxu0 0.0
    %152 = vmatprep.subr.mxu0 0.0
    %153 = vmatpush1.msra.mxu0 0.0
    %154 = vmatprep.subr.mxu0 0.0
    %155 = vmatpush1.msra.mxu0 0.0
    %156 = vmatprep.subr.mxu0 0.0
    %157 = vmatpush1.msra.mxu0 0.0
    %158 = vmatprep.subr.mxu0 0.0
    %159 = vmatpush1.msra.mxu0 0.0
    %160 = vmatprep.subr.mxu0 0.0
    %161 = vmatpush1.msra.mxu0 0.0
    %162 = vmatprep.subr.mxu0 0.0
    %163 = vmatpush1.msra.mxu0 0.0
    %164 = vmatprep.subr.mxu0 0.0
    %165 = vmatpush1.msra.mxu0 0.0
    %166 = vmatprep.subr.mxu0 0.0
    %167 = vmatpush1.msra.mxu0 0.0
    %168 = vmatprep.subr.mxu0 0.0
    %169 = vmatpush1.msra.mxu0 0.0
    %170 = vmatprep.subr.mxu0 0.0
    %171 = vmatpush1.msra.mxu0 0.0
    %172 = vmatprep.subr.mxu0 0.0
    %173 = vmatpush1.msra.mxu0 0.0
    %174 = vmatprep.subr.mxu0 0.0
    %175 = vmatpush1.msra.mxu0 0.0
    %176 = vmatprep.subr.mxu0 0.0
    %177 = vmatpush1.msra.mxu0 0.0
    %178 = vmatprep.subr.mxu0 0.0
    %179 = vmatpush1.msra.mxu0 0.0
    %180 = vmatprep.subr.mxu0 0.0
    %181 = vmatpush1.msra.mxu0 0.0
    %182 = vmatprep.subr.mxu0 0.0
    %183 = vmatpush1.msra.mxu0 0.0
    %184 = vmatprep.subr.mxu0 0.0
    %185 = vmatpush1.msra.mxu0 0.0
    %186 = vmatprep.subr.mxu0 0.0
    %187 = vmatpush1.msra.mxu0 0.0
    %188 = vmatprep.subr.mxu0 0.0
    %189 = vmatpush1.msra.mxu0 0.0
    %190 = vmatprep.subr.mxu0 0.0
    %191 = vmatpush1.msra.mxu0 0.0
    %192 = vmatprep.subr.mxu0 0.0
    %193 = vmatpush1.msra.mxu0 0.0
    %194 = vmatprep.subr.mxu0 0.0
    %195 = vmatpush1.msra.mxu0 0.0
    %196 = vmatprep.subr.mxu0 0.0
    %197 = vmatpush1.msra.mxu0 0.0
    %198 = vmatprep.subr.mxu0 0.0
    %199 = vmatpush1.msra.mxu0 0.0
    %200 = vmatprep.mubr.f32.mxu0 0.0
    %201 = vmatmul.mubr.f32.gmra.mrb[0].mxu0 %v134
    %v202 = vpop.f32.mrb[0].mxu0
    %v203 = vadd.f32 %v130, %v202
    %v204 = vpop.f32.mrb[0].mxu0
    %205 = vdwg.mxu0
    %v206 = vmax.f32 %v203, 0.0
    %vm207 = vcmask 60416
    %208 = vst.msk [vmem:[#allocation2] sm:$0xf] %vm207, %v206
    %v209 = vld [vmem:[%s5] sm:$0xff]
    %v210 = vld [vmem:[%s6] sm:$0x1]
    %v212 = vlaneseq
    %v213 = vshrl.u32 %v212, 7
    %v214 = vsub.s32 0, %v213
    %v215 = vrot.slane %v210, %v214
    %vm217 = vcmask 64512
    %v219 = vsel %vm217, %v206, 0
    %221 = vmatprep.subr.mxu0 0.0
    %222 = vmatpush1.msra.mxu0 %v209
    %223 = vmatprep.subr.mxu0 0.0
    %224 = vmatpush1.msra.mxu0 0.0
    %225 = vmatprep.subr.mxu0 0.0
    %226 = vmatpush1.msra.mxu0 0.0
    %227 = vmatprep.subr.mxu0 0.0
    %228 = vmatpush1.msra.mxu0 0.0
    %229 = vmatprep.subr.mxu0 0.0
    %230 = vmatpush1.msra.mxu0 0.0
    %231 = vmatprep.subr.mxu0 0.0
    %232 = vmatpush1.msra.mxu0 0.0
    %233 = vmatprep.subr.mxu0 0.0
    %234 = vmatpush1.msra.mxu0 0.0
    %235 = vmatprep.subr.mxu0 0.0
    %236 = vmatpush1.msra.mxu0 0.0
    %237 = vmatprep.subr.mxu0 0.0
    %238 = vmatpush1.msra.mxu0 0.0
    %239 = vmatprep.subr.mxu0 0.0
    %240 = vmatpush1.msra.mxu0 0.0
    %241 = vmatprep.subr.mxu0 0.0
    %242 = vmatpush1.msra.mxu0 0.0
    %243 = vmatprep.subr.mxu0 0.0
    %244 = vmatpush1.msra.mxu0 0.0
    %245 = vmatprep.subr.mxu0 0.0
    %246 = vmatpush1.msra.mxu0 0.0
    %247 = vmatprep.subr.mxu0 0.0
    %248 = vmatpush1.msra.mxu0 0.0
    %249 = vmatprep.subr.mxu0 0.0
    %250 = vmatpush1.msra.mxu0 0.0
    %251 = vmatprep.subr.mxu0 0.0
    %252 = vmatpush1.msra.mxu0 0.0
    %253 = vmatprep.subr.mxu0 0.0
    %254 = vmatpush1.msra.mxu0 0.0
    %255 = vmatprep.subr.mxu0 0.0
    %256 = vmatpush1.msra.mxu0 0.0
    %257 = vmatprep.subr.mxu0 0.0
    %258 = vmatpush1.msra.mxu0 0.0
    %259 = vmatprep.subr.mxu0 0.0
    %260 = vmatpush1.msra.mxu0 0.0
    %261 = vmatprep.subr.mxu0 0.0
    %262 = vmatpush1.msra.mxu0 0.0
    %263 = vmatprep.subr.mxu0 0.0
    %264 = vmatpush1.msra.mxu0 0.0
    %265 = vmatprep.subr.mxu0 0.0
    %266 = vmatpush1.msra.mxu0 0.0
    %267 = vmatprep.subr.mxu0 0.0
    %268 = vmatpush1.msra.mxu0 0.0
    %269 = vmatprep.subr.mxu0 0.0
    %270 = vmatpush1.msra.mxu0 0.0
    %271 = vmatprep.subr.mxu0 0.0
    %272 = vmatpush1.msra.mxu0 0.0
    %273 = vmatprep.subr.mxu0 0.0
    %274 = vmatpush1.msra.mxu0 0.0
    %275 = vmatprep.subr.mxu0 0.0
    %276 = vmatpush1.msra.mxu0 0.0
    %277 = vmatprep.subr.mxu0 0.0
    %278 = vmatpush1.msra.mxu0 0.0
    %279 = vmatprep.subr.mxu0 0.0
    %280 = vmatpush1.msra.mxu0 0.0
    %281 = vmatprep.subr.mxu0 0.0
    %282 = vmatpush1.msra.mxu0 0.0
    %283 = vmatprep.subr.mxu0 0.0
    %284 = vmatpush1.msra.mxu0 0.0
    %285 = vmatprep.mubr.f32.mxu0 0.0
    %286 = vmatmul.mubr.f32.gmra.mrb[0].mxu0 %v219
    %v287 = vpop.f32.mrb[0].mxu0
    %v288 = vadd.f32 %v215, %v287
    %v289 = vpop.f32.mrb[0].mxu0
    %290 = vdwg.mxu0
    %v291 = vmax.f32 %v288, 0.0
    %v292 = vld [vmem:[%s7] sm:$0xff]
    %v293 = vld [vmem:[%s7 + $0x8] sm:$0xff]
    %v294 = vld [vmem:[%s7 + $0x10] sm:$0xff]
    %v295 = vld [vmem:[%s7 + $0x18] sm:$0xff]
    %v296 = vld [vmem:[%s8] sm:$0x1]
    %v298 = vlaneseq
    %v299 = vshrl.u32 %v298, 7
    %v300 = vsub.s32 0, %v299
    %v301 = vrot.slane %v296, %v300
    %v304 = vsel %vm132, %v291, 0
    %306 = vmatprep.subr.mxu0 0.0
    %307 = vmatpush1.msra.mxu0 %v292
    %308 = vmatprep.subr.mxu0 0.0
    %309 = vmatpush1.msra.mxu0 %v293
    %310 = vmatprep.subr.mxu0 0.0
    %311 = vmatpush1.msra.mxu0 %v294
    %312 = vmatprep.subr.mxu0 0.0
    %313 = vmatpush1.msra.mxu0 %v295
    %314 = vmatprep.subr.mxu0 0.0
    %315 = vmatpush1.msra.mxu0 0.0
    %316 = vmatprep.subr.mxu0 0.0
    %317 = vmatpush1.msra.mxu0 0.0
    %318 = vmatprep.subr.mxu0 0.0
    %319 = vmatpush1.msra.mxu0 0.0
    %320 = vmatprep.subr.mxu0 0.0
    %321 = vmatpush1.msra.mxu0 0.0
    %322 = vmatprep.subr.mxu0 0.0
    %323 = vmatpush1.msra.mxu0 0.0
    %324 = vmatprep.subr.mxu0 0.0
    %325 = vmatpush1.msra.mxu0 0.0
    %326 = vmatprep.subr.mxu0 0.0
    %327 = vmatpush1.msra.mxu0 0.0
    %328 = vmatprep.subr.mxu0 0.0
    %329 = vmatpush1.msra.mxu0 0.0
    %330 = vmatprep.subr.mxu0 0.0
    %331 = vmatpush1.msra.mxu0 0.0
    %332 = vmatprep.subr.mxu0 0.0
    %333 = vmatpush1.msra.mxu0 0.0
    %334 = vmatprep.subr.mxu0 0.0
    %335 = vmatpush1.msra.mxu0 0.0
    %336 = vmatprep.subr.mxu0 0.0
    %337 = vmatpush1.msra.mxu0 0.0
    %338 = vmatprep.subr.mxu0 0.0
    %339 = vmatpush1.msra.mxu0 0.0
    %340 = vmatprep.subr.mxu0 0.0
    %341 = vmatpush1.msra.mxu0 0.0
    %342 = vmatprep.subr.mxu0 0.0
    %343 = vmatpush1.msra.mxu0 0.0
    %344 = vmatprep.subr.mxu0 0.0
    %345 = vmatpush1.msra.mxu0 0.0
    %346 = vmatprep.subr.mxu0 0.0
    %347 = vmatpush1.msra.mxu0 0.0
    %348 = vmatprep.subr.mxu0 0.0
    %349 = vmatpush1.msra.mxu0 0.0
    %350 = vmatprep.subr.mxu0 0.0
    %351 = vmatpush1.msra.mxu0 0.0
    %352 = vmatprep.subr.mxu0 0.0
    %353 = vmatpush1.msra.mxu0 0.0
    %354 = vmatprep.subr.mxu0 0.0
    %355 = vmatpush1.msra.mxu0 0.0
    %356 = vmatprep.subr.mxu0 0.0
    %357 = vmatpush1.msra.mxu0 0.0
    %358 = vmatprep.subr.mxu0 0.0
    %359 = vmatpush1.msra.mxu0 0.0
    %360 = vmatprep.subr.mxu0 0.0
    %361 = vmatpush1.msra.mxu0 0.0
    %362 = vmatprep.subr.mxu0 0.0
    %363 = vmatpush1.msra.mxu0 0.0
    %364 = vmatprep.subr.mxu0 0.0
    %365 = vmatpush1.msra.mxu0 0.0
    %366 = vmatprep.subr.mxu0 0.0
    %367 = vmatpush1.msra.mxu0 0.0
    %368 = vmatprep.subr.mxu0 0.0
    %369 = vmatpush1.msra.mxu0 0.0
    %370 = vmatprep.mubr.f32.mxu0 0.0
    %371 = vmatmul.mubr.f32.gmra.mrb[0].mxu0 %v304
    %v372 = vpop.f32.mrb[0].mxu0
    %v373 = vadd.f32 %v301, %v372
    %v374 = vpop.f32.mrb[0].mxu0
    %375 = vdwg.mxu0
    %vm376 = vcmask 125952
    %377 = vst.msk [vmem:[#allocation4] sm:$0xf] %vm376, %v373
    // Predicated region
    $region38: #{tpu_custom_call.1} parent=1 // pred_check
      _
    $region39: #{tpu_custom_call.1} parent=1 // pred_check_branch
      %379 = sbr.rel (0) target = $region41
    $region40: #{tpu_custom_call.1} parent=1 // pred_region
      %s381 = ssub.s32 64, 64
      %382 = vsyncadd [#allocation3], %s381
      %s384 = sshll.u32 [#allocation2], 4
      %s385 = int_to_ptr.vmem [resolvable:$true] %s384
      %387 = dma.vmem_to_hbm [thread:$0]  %s385, 64, %s9, [#allocation3]
    $region41: #{tpu_custom_call.1} parent=1 // pred_fallthru
      _
    // Predicated region
    $region42: #{tpu_custom_call.1} parent=1 // pred_check
      _
    $region43: #{tpu_custom_call.1} parent=1 // pred_check_branch
      %389 = sbr.rel (0) target = $region45
    $region44: #{tpu_custom_call.1} parent=1 // pred_region
      %s391 = ssub.s32 64, 64
      %392 = vsyncadd [#allocation5], %s391
      %s394 = sshll.u32 [#allocation4], 4
      %s395 = int_to_ptr.vmem [resolvable:$true] %s394
      %397 = dma.vmem_to_hbm [thread:$0]  %s395, 64, %s10, [#allocation5]
    $region45: #{tpu_custom_call.1} parent=1 // pred_fallthru
      _
    // Predicated region
    $region46: #{tpu_custom_call.1} parent=1 // pred_check
      _
    $region47: #{tpu_custom_call.1} parent=1 // pred_check_branch
      %399 = sbr.rel (0) target = $region49
    $region48: #{tpu_custom_call.1} parent=1 // pred_region
      %400 = dma.done [#allocation3], 64
    $region49: #{tpu_custom_call.1} parent=1 // pred_fallthru
      _
    // Predicated region
    $region50: #{tpu_custom_call.1} parent=1 // pred_check
      _
    $region51: #{tpu_custom_call.1} parent=1 // pred_check_branch
      %402 = sbr.rel (0) target = $region53
    $region52: #{tpu_custom_call.1} parent=1 // pred_region
      %403 = dma.done [#allocation5], 64
    $region53: #{tpu_custom_call.1} parent=1 // pred_fallthru
      _
    %404 = vsyncpa [#allocation3], 1
    %405 = vsyncpa [#allocation5], 1

// kernel: tpu_custom_call.1
$region0: #{tpu_custom_call.1}
  #allocation0 [shape = 'u32[]', space=smem, size = 0x4, offset = 0x4, fixed_abs, tag = 'smem constant byte address 0x4 - core index']
  #allocation1 [shape = 'u32[144,128]{1,0:T(1,128)}', space=vmem, size = 0x12000, scoped, tag = 'internal scratch']
  %s0 = inlined_call_operand.vmem [shape: f32[4,16], index: 0, kind: input, shape index: {}]
  %s1 = inlined_call_operand.vmem [shape: f32[16,32], index: 1, kind: input, shape index: {}]
  %s2 = inlined_call_operand.vmem [shape: f32[1,32], index: 2, kind: input, shape index: {}]
  %s3 = inlined_call_operand.vmem [shape: f32[32,8], index: 3, kind: input, shape index: {}]
  %s4 = inlined_call_operand.vmem [shape: f32[1,8], index: 4, kind: input, shape index: {}]
  %s5 = inlined_call_operand.vmem [shape: f32[8,32], index: 5, kind: input, shape index: {}]
  %s6 = inlined_call_operand.vmem [shape: f32[1,32], index: 6, kind: input, shape index: {}]
  %s7 = inlined_call_operand.vmem [shape: f32[32,16], index: 7, kind: input, shape index: {}]
  %s8 = inlined_call_operand.vmem [shape: f32[1,16], index: 8, kind: input, shape index: {}]
  %s9 = inlined_call_operand.hbm [shape: f32[4,8], index: 9, kind: output, shape index: {0}]
  %s10 = inlined_call_operand.hbm [shape: f32[4,16], index: 10, kind: output, shape index: {1}]
  %11 = xla_tuple %s9, %s10
  %s12 = sld [smem:[#allocation0]]
  $region54: #{tpu_custom_call.1} parent=0
    _
  %s14 = ssub.s32 1, %s12
  %s15 = scalar_select 0, %s14, %s12
  $region1: #{tpu_custom_call.1} parent=0
    #allocation2 [shape = 'u8[2048]{0}', space=vmem, size = 0x800, scoped, tag = 'output window, operand 0, single buffered']
    #allocation3 [shape = 's32[1]{0}', space=sflag, size = 0x4, scoped, tag = 'scoped memory for tpu_custom_call.1']
    #allocation4 [shape = 'u8[2048]{0}', space=vmem, size = 0x800, scoped, tag = 'output window, operand 1, single buffered']
    #allocation5 [shape = 's32[1]{0}', space=sflag, size = 0x4, scoped, tag = 'scoped memory for tpu_custom_call.1']
    %16 = vsyncpa [#allocation3], 0
    %17 = vsyncpa [#allocation5], 0
    // Predicated region
    $region2: #{tpu_custom_call.1} parent=1 // pred_check
      _
    $region3: #{tpu_custom_call.1} parent=1 // pred_check_branch
      %19 = sbr.rel (0) target = $region5
    $region4: #{tpu_custom_call.1} parent=1 // pred_region
      _
    $region5: #{tpu_custom_call.1} parent=1 // pred_fallthru
      _
    // Predicated region
    $region6: #{tpu_custom_call.1} parent=1 // pred_check
      _
    $region7: #{tpu_custom_call.1} parent=1 // pred_check_branch
      %21 = sbr.rel (0) target = $region9
    $region8: #{tpu_custom_call.1} parent=1 // pred_region
      _
    $region9: #{tpu_custom_call.1} parent=1 // pred_fallthru
      _
    // Predicated region
    $region10: #{tpu_custom_call.1} parent=1 // pred_check
      _
    $region11: #{tpu_custom_call.1} parent=1 // pred_check_branch
      %23 = sbr.rel (0) target = $region13
    $region12: #{tpu_custom_call.1} parent=1 // pred_region
      _
    $region13: #{tpu_custom_call.1} parent=1 // pred_fallthru
      _
    // Predicated region
    $region14: #{tpu_custom_call.1} parent=1 // pred_check
      _
    $region15: #{tpu_custom_call.1} parent=1 // pred_check_branch
      %25 = sbr.rel (0) target = $region17
    $region16: #{tpu_custom_call.1} parent=1 // pred_region
      _
    $region17: #{tpu_custom_call.1} parent=1 // pred_fallthru
      _
    // Predicated region
    $region18: #{tpu_custom_call.1} parent=1 // pred_check
      _
    $region19: #{tpu_custom_call.1} parent=1 // pred_check_branch
      %27 = sbr.rel (0) target = $region21
    $region20: #{tpu_custom_call.1} parent=1 // pred_region
      _
    $region21: #{tpu_custom_call.1} parent=1 // pred_fallthru
      _
    // Predicated region
    $region22: #{tpu_custom_call.1} parent=1 // pred_check
      _
    $region23: #{tpu_custom_call.1} parent=1 // pred_check_branch
      %29 = sbr.rel (0) target = $region25
    $region24: #{tpu_custom_call.1} parent=1 // pred_region
      _
    $region25: #{tpu_custom_call.1} parent=1 // pred_fallthru
      _
    // Predicated region
    $region26: #{tpu_custom_call.1} parent=1 // pred_check
      _
    $region27: #{tpu_custom_call.1} parent=1 // pred_check_branch
      %31 = sbr.rel (0) target = $region29
    $region28: #{tpu_custom_call.1} parent=1 // pred_region
      _
    $region29: #{tpu_custom_call.1} parent=1 // pred_fallthru
      _
    // Predicated region
    $region30: #{tpu_custom_call.1} parent=1 // pred_check
      _
    $region31: #{tpu_custom_call.1} parent=1 // pred_check_branch
      %33 = sbr.rel (0) target = $region33
    $region32: #{tpu_custom_call.1} parent=1 // pred_region
      _
    $region33: #{tpu_custom_call.1} parent=1 // pred_fallthru
      _
    // Predicated region
    $region34: #{tpu_custom_call.1} parent=1 // pred_check
      _
    $region35: #{tpu_custom_call.1} parent=1 // pred_check_branch
      %35 = sbr.rel (0) target = $region37
    $region36: #{tpu_custom_call.1} parent=1 // pred_region
      _
    $region37: #{tpu_custom_call.1} parent=1 // pred_fallthru
      _
    %v36 = vld [vmem:[%s0] sm:$0xf]
    %v37 = vld [vmem:[%s1] sm:$0xff]
    %v38 = vld [vmem:[%s1 + $0x8] sm:$0xff]
    %v39 = vld [vmem:[%s2] sm:$0x1]
    %v41 = vlaneseq
    %v42 = vshrl.u32 %v41, 7
    %v43 = vsub.s32 0, %v42
    %v44 = vrot.slane %v39, %v43
    %vm46 = vcmask 130048
    %v48 = vsel %vm46, %v36, 0
    %50 = vmatprep.subr.mxu0 0.0
    %51 = vmatpush1.msra.mxu0 %v37
    %52 = vmatprep.subr.mxu0 0.0
    %53 = vmatpush1.msra.mxu0 %v38
    %54 = vmatprep.subr.mxu0 0.0
    %55 = vmatpush1.msra.mxu0 0.0
    %56 = vmatprep.subr.mxu0 0.0
    %57 = vmatpush1.msra.mxu0 0.0
    %58 = vmatprep.subr.mxu0 0.0
    %59 = vmatpush1.msra.mxu0 0.0
    %60 = vmatprep.subr.mxu0 0.0
    %61 = vmatpush1.msra.mxu0 0.0
    %62 = vmatprep.subr.mxu0 0.0
    %63 = vmatpush1.msra.mxu0 0.0
    %64 = vmatprep.subr.mxu0 0.0
    %65 = vmatpush1.msra.mxu0 0.0
    %66 = vmatprep.subr.mxu0 0.0
    %67 = vmatpush1.msra.mxu0 0.0
    %68 = vmatprep.subr.mxu0 0.0
    %69 = vmatpush1.msra.mxu0 0.0
    %70 = vmatprep.subr.mxu0 0.0
    %71 = vmatpush1.msra.mxu0 0.0
    %72 = vmatprep.subr.mxu0 0.0
    %73 = vmatpush1.msra.mxu0 0.0
    %74 = vmatprep.subr.mxu0 0.0
    %75 = vmatpush1.msra.mxu0 0.0
    %76 = vmatprep.subr.mxu0 0.0
    %77 = vmatpush1.msra.mxu0 0.0
    %78 = vmatprep.subr.mxu0 0.0
    %79 = vmatpush1.msra.mxu0 0.0
    %80 = vmatprep.subr.mxu0 0.0
    %81 = vmatpush1.msra.mxu0 0.0
    %82 = vmatprep.subr.mxu0 0.0
    %83 = vmatpush1.msra.mxu0 0.0
    %84 = vmatprep.subr.mxu0 0.0
    %85 = vmatpush1.msra.mxu0 0.0
    %86 = vmatprep.subr.mxu0 0.0
    %87 = vmatpush1.msra.mxu0 0.0
    %88 = vmatprep.subr.mxu0 0.0
    %89 = vmatpush1.msra.mxu0 0.0
    %90 = vmatprep.subr.mxu0 0.0
    %91 = vmatpush1.msra.mxu0 0.0
    %92 = vmatprep.subr.mxu0 0.0
    %93 = vmatpush1.msra.mxu0 0.0
    %94 = vmatprep.subr.mxu0 0.0
    %95 = vmatpush1.msra.mxu0 0.0
    %96 = vmatprep.subr.mxu0 0.0
    %97 = vmatpush1.msra.mxu0 0.0
    %98 = vmatprep.subr.mxu0 0.0
    %99 = vmatpush1.msra.mxu0 0.0
    %100 = vmatprep.subr.mxu0 0.0
    %101 = vmatpush1.msra.mxu0 0.0
    %102 = vmatprep.subr.mxu0 0.0
    %103 = vmatpush1.msra.mxu0 0.0
    %104 = vmatprep.subr.mxu0 0.0
    %105 = vmatpush1.msra.mxu0 0.0
    %106 = vmatprep.subr.mxu0 0.0
    %107 = vmatpush1.msra.mxu0 0.0
    %108 = vmatprep.subr.mxu0 0.0
    %109 = vmatpush1.msra.mxu0 0.0
    %110 = vmatprep.subr.mxu0 0.0
    %111 = vmatpush1.msra.mxu0 0.0
    %112 = vmatprep.subr.mxu0 0.0
    %113 = vmatpush1.msra.mxu0 0.0
    %114 = vmatprep.mubr.f32.mxu0 0.0
    %115 = vmatmul.mubr.f32.gmra.mrb[0].mxu0 %v48
    %v116 = vpop.f32.mrb[0].mxu0
    %v117 = vadd.f32 %v44, %v116
    %v118 = vpop.f32.mrb[0].mxu0
    %119 = vdwg.mxu0
    %v120 = vmax.f32 %v117, 0.0
    %v121 = vld [vmem:[%s3] sm:$0xff]
    %v122 = vld [vmem:[%s3 + $0x8] sm:$0xff]
    %v123 = vld [vmem:[%s3 + $0x10] sm:$0xff]
    %v124 = vld [vmem:[%s3 + $0x18] sm:$0xff]
    %v125 = vld [vmem:[%s4] sm:$0x1]
    %v127 = vlaneseq
    %v128 = vshrl.u32 %v127, 7
    %v129 = vsub.s32 0, %v128
    %v130 = vrot.slane %v125, %v129
    %vm132 = vcmask 261120
    %v134 = vsel %vm132, %v120, 0
    %136 = vmatprep.subr.mxu0 0.0
    %137 = vmatpush1.msra.mxu0 %v121
    %138 = vmatprep.subr.mxu0 0.0
    %139 = vmatpush1.msra.mxu0 %v122
    %140 = vmatprep.subr.mxu0 0.0
    %141 = vmatpush1.msra.mxu0 %v123
    %142 = vmatprep.subr.mxu0 0.0
    %143 = vmatpush1.msra.mxu0 %v124
    %144 = vmatprep.subr.mxu0 0.0
    %145 = vmatpush1.msra.mxu0 0.0
    %146 = vmatprep.subr.mxu0 0.0
    %147 = vmatpush1.msra.mxu0 0.0
    %148 = vmatprep.subr.mxu0 0.0
    %149 = vmatpush1.msra.mxu0 0.0
    %150 = vmatprep.subr.mxu0 0.0
    %151 = vmatpush1.msra.mxu0 0.0
    %152 = vmatprep.subr.mxu0 0.0
    %153 = vmatpush1.msra.mxu0 0.0
    %154 = vmatprep.subr.mxu0 0.0
    %155 = vmatpush1.msra.mxu0 0.0
    %156 = vmatprep.subr.mxu0 0.0
    %157 = vmatpush1.msra.mxu0 0.0
    %158 = vmatprep.subr.mxu0 0.0
    %159 = vmatpush1.msra.mxu0 0.0
    %160 = vmatprep.subr.mxu0 0.0
    %161 = vmatpush1.msra.mxu0 0.0
    %162 = vmatprep.subr.mxu0 0.0
    %163 = vmatpush1.msra.mxu0 0.0
    %164 = vmatprep.subr.mxu0 0.0
    %165 = vmatpush1.msra.mxu0 0.0
    %166 = vmatprep.subr.mxu0 0.0
    %167 = vmatpush1.msra.mxu0 0.0
    %168 = vmatprep.subr.mxu0 0.0
    %169 = vmatpush1.msra.mxu0 0.0
    %170 = vmatprep.subr.mxu0 0.0
    %171 = vmatpush1.msra.mxu0 0.0
    %172 = vmatprep.subr.mxu0 0.0
    %173 = vmatpush1.msra.mxu0 0.0
    %174 = vmatprep.subr.mxu0 0.0
    %175 = vmatpush1.msra.mxu0 0.0
    %176 = vmatprep.subr.mxu0 0.0
    %177 = vmatpush1.msra.mxu0 0.0
    %178 = vmatprep.subr.mxu0 0.0
    %179 = vmatpush1.msra.mxu0 0.0
    %180 = vmatprep.subr.mxu0 0.0
    %181 = vmatpush1.msra.mxu0 0.0
    %182 = vmatprep.subr.mxu0 0.0
    %183 = vmatpush1.msra.mxu0 0.0
    %184 = vmatprep.subr.mxu0 0.0
    %185 = vmatpush1.msra.mxu0 0.0
    %186 = vmatprep.subr.mxu0 0.0
    %187 = vmatpush1.msra.mxu0 0.0
    %188 = vmatprep.subr.mxu0 0.0
    %189 = vmatpush1.msra.mxu0 0.0
    %190 = vmatprep.subr.mxu0 0.0
    %191 = vmatpush1.msra.mxu0 0.0
    %192 = vmatprep.subr.mxu0 0.0
    %193 = vmatpush1.msra.mxu0 0.0
    %194 = vmatprep.subr.mxu0 0.0
    %195 = vmatpush1.msra.mxu0 0.0
    %196 = vmatprep.subr.mxu0 0.0
    %197 = vmatpush1.msra.mxu0 0.0
    %198 = vmatprep.subr.mxu0 0.0
    %199 = vmatpush1.msra.mxu0 0.0
    %200 = vmatprep.mubr.f32.mxu0 0.0
    %201 = vmatmul.mubr.f32.gmra.mrb[0].mxu0 %v134
    %v202 = vpop.f32.mrb[0].mxu0
    %v203 = vadd.f32 %v130, %v202
    %v204 = vpop.f32.mrb[0].mxu0
    %205 = vdwg.mxu0
    %v206 = vmax.f32 %v203, 0.0
    %vm207 = vcmask 60416
    %208 = vst.msk [vmem:[#allocation2] sm:$0xf] %vm207, %v206
    %v209 = vld [vmem:[%s5] sm:$0xff]
    %v210 = vld [vmem:[%s6] sm:$0x1]
    %v212 = vlaneseq
    %v213 = vshrl.u32 %v212, 7
    %v214 = vsub.s32 0, %v213
    %v215 = vrot.slane %v210, %v214
    %vm217 = vcmask 64512
    %v219 = vsel %vm217, %v206, 0
    %221 = vmatprep.subr.mxu0 0.0
    %222 = vmatpush1.msra.mxu0 %v209
    %223 = vmatprep.subr.mxu0 0.0
    %224 = vmatpush1.msra.mxu0 0.0
    %225 = vmatprep.subr.mxu0 0.0
    %226 = vmatpush1.msra.mxu0 0.0
    %227 = vmatprep.subr.mxu0 0.0
    %228 = vmatpush1.msra.mxu0 0.0
    %229 = vmatprep.subr.mxu0 0.0
    %230 = vmatpush1.msra.mxu0 0.0
    %231 = vmatprep.subr.mxu0 0.0
    %232 = vmatpush1.msra.mxu0 0.0
    %233 = vmatprep.subr.mxu0 0.0
    %234 = vmatpush1.msra.mxu0 0.0
    %235 = vmatprep.subr.mxu0 0.0
    %236 = vmatpush1.msra.mxu0 0.0
    %237 = vmatprep.subr.mxu0 0.0
    %238 = vmatpush1.msra.mxu0 0.0
    %239 = vmatprep.subr.mxu0 0.0
    %240 = vmatpush1.msra.mxu0 0.0
    %241 = vmatprep.subr.mxu0 0.0
    %242 = vmatpush1.msra.mxu0 0.0
    %243 = vmatprep.subr.mxu0 0.0
    %244 = vmatpush1.msra.mxu0 0.0
    %245 = vmatprep.subr.mxu0 0.0
    %246 = vmatpush1.msra.mxu0 0.0
    %247 = vmatprep.subr.mxu0 0.0
    %248 = vmatpush1.msra.mxu0 0.0
    %249 = vmatprep.subr.mxu0 0.0
    %250 = vmatpush1.msra.mxu0 0.0
    %251 = vmatprep.subr.mxu0 0.0
    %252 = vmatpush1.msra.mxu0 0.0
    %253 = vmatprep.subr.mxu0 0.0
    %254 = vmatpush1.msra.mxu0 0.0
    %255 = vmatprep.subr.mxu0 0.0
    %256 = vmatpush1.msra.mxu0 0.0
    %257 = vmatprep.subr.mxu0 0.0
    %258 = vmatpush1.msra.mxu0 0.0
    %259 = vmatprep.subr.mxu0 0.0
    %260 = vmatpush1.msra.mxu0 0.0
    %261 = vmatprep.subr.mxu0 0.0
    %262 = vmatpush1.msra.mxu0 0.0
    %263 = vmatprep.subr.mxu0 0.0
    %264 = vmatpush1.msra.mxu0 0.0
    %265 = vmatprep.subr.mxu0 0.0
    %266 = vmatpush1.msra.mxu0 0.0
    %267 = vmatprep.subr.mxu0 0.0
    %268 = vmatpush1.msra.mxu0 0.0
    %269 = vmatprep.subr.mxu0 0.0
    %270 = vmatpush1.msra.mxu0 0.0
    %271 = vmatprep.subr.mxu0 0.0
    %272 = vmatpush1.msra.mxu0 0.0
    %273 = vmatprep.subr.mxu0 0.0
    %274 = vmatpush1.msra.mxu0 0.0
    %275 = vmatprep.subr.mxu0 0.0
    %276 = vmatpush1.msra.mxu0 0.0
    %277 = vmatprep.subr.mxu0 0.0
    %278 = vmatpush1.msra.mxu0 0.0
    %279 = vmatprep.subr.mxu0 0.0
    %280 = vmatpush1.msra.mxu0 0.0
    %281 = vmatprep.subr.mxu0 0.0
    %282 = vmatpush1.msra.mxu0 0.0
    %283 = vmatprep.subr.mxu0 0.0
    %284 = vmatpush1.msra.mxu0 0.0
    %285 = vmatprep.mubr.f32.mxu0 0.0
    %286 = vmatmul.mubr.f32.gmra.mrb[0].mxu0 %v219
    %v287 = vpop.f32.mrb[0].mxu0
    %v288 = vadd.f32 %v215, %v287
    %v289 = vpop.f32.mrb[0].mxu0
    %290 = vdwg.mxu0
    %v291 = vmax.f32 %v288, 0.0
    %v292 = vld [vmem:[%s7] sm:$0xff]
    %v293 = vld [vmem:[%s7 + $0x8] sm:$0xff]
    %v294 = vld [vmem:[%s7 + $0x10] sm:$0xff]
    %v295 = vld [vmem:[%s7 + $0x18] sm:$0xff]
    %v296 = vld [vmem:[%s8] sm:$0x1]
    %v298 = vlaneseq
    %v299 = vshrl.u32 %v298, 7
    %v300 = vsub.s32 0, %v299
    %v301 = vrot.slane %v296, %v300
    %v304 = vsel %vm132, %v291, 0
    %306 = vmatprep.subr.mxu0 0.0
    %307 = vmatpush1.msra.mxu0 %v292
    %308 = vmatprep.subr.mxu0 0.0
    %309 = vmatpush1.msra.mxu0 %v293
    %310 = vmatprep.subr.mxu0 0.0
    %311 = vmatpush1.msra.mxu0 %v294
    %312 = vmatprep.subr.mxu0 0.0
    %313 = vmatpush1.msra.mxu0 %v295
    %314 = vmatprep.subr.mxu0 0.0
    %315 = vmatpush1.msra.mxu0 0.0
    %316 = vmatprep.subr.mxu0 0.0
    %317 = vmatpush1.msra.mxu0 0.0
    %318 = vmatprep.subr.mxu0 0.0
    %319 = vmatpush1.msra.mxu0 0.0
    %320 = vmatprep.subr.mxu0 0.0
    %321 = vmatpush1.msra.mxu0 0.0
    %322 = vmatprep.subr.mxu0 0.0
    %323 = vmatpush1.msra.mxu0 0.0
    %324 = vmatprep.subr.mxu0 0.0
    %325 = vmatpush1.msra.mxu0 0.0
    %326 = vmatprep.subr.mxu0 0.0
    %327 = vmatpush1.msra.mxu0 0.0
    %328 = vmatprep.subr.mxu0 0.0
    %329 = vmatpush1.msra.mxu0 0.0
    %330 = vmatprep.subr.mxu0 0.0
    %331 = vmatpush1.msra.mxu0 0.0
    %332 = vmatprep.subr.mxu0 0.0
    %333 = vmatpush1.msra.mxu0 0.0
    %334 = vmatprep.subr.mxu0 0.0
    %335 = vmatpush1.msra.mxu0 0.0
    %336 = vmatprep.subr.mxu0 0.0
    %337 = vmatpush1.msra.mxu0 0.0
    %338 = vmatprep.subr.mxu0 0.0
    %339 = vmatpush1.msra.mxu0 0.0
    %340 = vmatprep.subr.mxu0 0.0
    %341 = vmatpush1.msra.mxu0 0.0
    %342 = vmatprep.subr.mxu0 0.0
    %343 = vmatpush1.msra.mxu0 0.0
    %344 = vmatprep.subr.mxu0 0.0
    %345 = vmatpush1.msra.mxu0 0.0
    %346 = vmatprep.subr.mxu0 0.0
    %347 = vmatpush1.msra.mxu0 0.0
    %348 = vmatprep.subr.mxu0 0.0
    %349 = vmatpush1.msra.mxu0 0.0
    %350 = vmatprep.subr.mxu0 0.0
    %351 = vmatpush1.msra.mxu0 0.0
    %352 = vmatprep.subr.mxu0 0.0
    %353 = vmatpush1.msra.mxu0 0.0
    %354 = vmatprep.subr.mxu0 0.0
    %355 = vmatpush1.msra.mxu0 0.0
    %356 = vmatprep.subr.mxu0 0.0
    %357 = vmatpush1.msra.mxu0 0.0
    %358 = vmatprep.subr.mxu0 0.0
    %359 = vmatpush1.msra.mxu0 0.0
    %360 = vmatprep.subr.mxu0 0.0
    %361 = vmatpush1.msra.mxu0 0.0
    %362 = vmatprep.subr.mxu0 0.0
    %363 = vmatpush1.msra.mxu0 0.0
    %364 = vmatprep.subr.mxu0 0.0
    %365 = vmatpush1.msra.mxu0 0.0
    %366 = vmatprep.subr.mxu0 0.0
    %367 = vmatpush1.msra.mxu0 0.0
    %368 = vmatprep.subr.mxu0 0.0
    %369 = vmatpush1.msra.mxu0 0.0
    %370 = vmatprep.mubr.f32.mxu0 0.0
    %371 = vmatmul.mubr.f32.gmra.mrb[0].mxu0 %v304
    %v372 = vpop.f32.mrb[0].mxu0
    %v373 = vadd.f32 %v301, %v372
    %v374 = vpop.f32.mrb[0].mxu0
    %375 = vdwg.mxu0
    %vm376 = vcmask 125952
    %377 = vst.msk [vmem:[#allocation4] sm:$0xf] %vm376, %v373
    // Predicated region
    $region38: #{tpu_custom_call.1} parent=1 // pred_check
      _
    $region39: #{tpu_custom_call.1} parent=1 // pred_check_branch
      %379 = sbr.rel (0) target = $region41
    $region40: #{tpu_custom_call.1} parent=1 // pred_region
      %s381 = ssub.s32 64, 64
      %382 = vsyncadd [#allocation3], %s381
      %s384 = sshll.u32 [#allocation2], 4
      %s385 = int_to_ptr.vmem [resolvable:$true] %s384
      %387 = dma.vmem_to_hbm [thread:$0]  %s385, 64, %s9, [#allocation3]
    $region41: #{tpu_custom_call.1} parent=1 // pred_fallthru
      _
    // Predicated region
    $region42: #{tpu_custom_call.1} parent=1 // pred_check
      _
    $region43: #{tpu_custom_call.1} parent=1 // pred_check_branch
      %389 = sbr.rel (0) target = $region45
    $region44: #{tpu_custom_call.1} parent=1 // pred_region
      %s391 = ssub.s32 64, 64
      %392 = vsyncadd [#allocation5], %s391
      %s394 = sshll.u32 [#allocation4], 4
      %s395 = int_to_ptr.vmem [resolvable:$true] %s394
      %397 = dma.vmem_to_hbm [thread:$0]  %s395, 64, %s10, [#allocation5]
    $region45: #{tpu_custom_call.1} parent=1 // pred_fallthru
      _
    // Predicated region
    $region46: #{tpu_custom_call.1} parent=1 // pred_check
      _
    $region47: #{tpu_custom_call.1} parent=1 // pred_check_branch
      %399 = sbr.rel (0) target = $region49
    $region48: #{tpu_custom_call.1} parent=1 // pred_region
      %400 = dma.done [#allocation3], 64
    $region49: #{tpu_custom_call.1} parent=1 // pred_fallthru
      _
    // Predicated region
    $region50: #{tpu_custom_call.1} parent=1 // pred_check
      _
    $region51: #{tpu_custom_call.1} parent=1 // pred_check_branch
      %402 = sbr.rel (0) target = $region53
    $region52: #{tpu_custom_call.1} parent=1 // pred_region
      %403 = dma.done [#allocation5], 64
    $region53: #{tpu_custom_call.1} parent=1 // pred_fallthru
      _
    %404 = vsyncpa [#allocation3], 1
    %405 = vsyncpa [#allocation5], 1

</llo_original>
